<compile_context>
chip_gen: v7x
topology: tpu7x:2x2x1
jax: 0.10.0
libtpu: 0.0.40
codegen_flags: <defaults>
</compile_context>

<pallas_src>
import jax
import jax.numpy as jnp
from jax.experimental import pallas as pl
from jax.experimental.pallas import tpu as pltpu

# Packed parameter layout inside one SMEM vector of 16 f32 scalars:
#   [0]     : x            (scalar input)
#   [1:4]   : w1[:, 0]     (3,)
#   [4:13]  : w2 row-major (3, 3)
#   [13:16] : w3[0, :]     (3,)
N_PACKED = 16


def mlp_kernel(p_ref, y_ref):
    # p_ref : SMEM f32[16]  (packed input + weights)
    # y_ref : SMEM f32[1]   (scalar output)
    x = p_ref[0]

    # Layer 1: h0 = relu(w1[:, 0] * x)  -> 3 scalars
    h0 = [jnp.maximum(p_ref[1 + i] * x, 0.0) for i in range(3)]

    # Layer 2: h1 = relu(w2 @ h0)  -> 3 scalars (3x3 = 9 scalar FMAs)
    h1 = []
    for i in range(3):
        acc = p_ref[4 + 3 * i + 0] * h0[0]
        acc = acc + p_ref[4 + 3 * i + 1] * h0[1]
        acc = acc + p_ref[4 + 3 * i + 2] * h0[2]
        h1.append(jnp.maximum(acc, 0.0))

    # Layer 3: y = w3[0, :] @ h1  -> 1 scalar
    y_ref[0] = p_ref[13] * h1[0] + p_ref[14] * h1[1] + p_ref[15] * h1[2]


def torch_mlp_forward(x, w1, w2, w3):
    """x: (1,) f32; w1: (3,1); w2: (3,3); w3: (1,3).  Returns (1,) f32."""
    # One packed host-side array -> one tiny SMEM transfer (no zero-padded
    # (8,128) tiles, no separate DMA per weight, no post-kernel slicing).
    packed = jnp.concatenate([
        x.reshape(-1).astype(jnp.float32),
        w1.reshape(-1).astype(jnp.float32),
        w2.reshape(-1).astype(jnp.float32),
        w3.reshape(-1).astype(jnp.float32),
    ])
    assert packed.shape == (N_PACKED,)

    y = pl.pallas_call(
        mlp_kernel,
        out_shape=jax.ShapeDtypeStruct((1,), jnp.float32),
        in_specs=[pl.BlockSpec(memory_space=pltpu.MemorySpace.SMEM)],
        out_specs=pl.BlockSpec(memory_space=pltpu.MemorySpace.SMEM),
    )(packed)
    return y  # already shape (1,)


if __name__ == "__main__":
    key = jax.random.PRNGKey(0)
    k_w1, k_w2, k_w3 = jax.random.split(key, 3)

    # torch.rand -> uniform [0, 1); parameter shapes from TorchMLP.__init__
    w1 = jax.random.uniform(k_w1, (3, 1), jnp.float32)
    w2 = jax.random.uniform(k_w2, (3, 3), jnp.float32)
    w3 = jax.random.uniform(k_w3, (1, 3), jnp.float32)

    # Input matches the reference script: x = [50.0]
    x = jnp.asarray([50.0], jnp.float32)

    y = torch_mlp_forward(x, w1, w2, w3)
    y = jax.block_until_ready(y)

    # Pure-JAX reference check of the forward semantics.
    r0 = jnp.maximum(w1 @ x, 0.0)
    r1 = jnp.maximum(w2 @ r0, 0.0)
    y_ref = w3 @ r1
    assert y.shape == (1,)
    assert jnp.allclose(y, y_ref, rtol=1e-5, atol=1e-5)

    print("KERNEL_OK")
</pallas_src>

<mosaic_0001>
module attributes {stable_mosaic.version = 11 : i64} {
  func.func @mlp_kernel(%arg0: memref<16xf32, #tpu.memory_space<smem>>, %arg1: memref<1xf32, #tpu.memory_space<smem>>) attributes {dimension_semantics = [], scalar_prefetch = 0 : i64, scratch_operands = 0 : i64, tpu.core_type = #tpu.core_type<tc>} {
    %c0 = arith.constant 0 : index
    %0 = memref.load %arg0[%c0] : memref<16xf32, #tpu.memory_space<smem>>
    %c1 = arith.constant 1 : index
    %1 = memref.load %arg0[%c1] : memref<16xf32, #tpu.memory_space<smem>>
    %2 = arith.mulf %1, %0 : f32
    %cst = arith.constant 0.000000e+00 : f32
    %3 = arith.maximumf %2, %cst : f32
    %c2 = arith.constant 2 : index
    %4 = memref.load %arg0[%c2] : memref<16xf32, #tpu.memory_space<smem>>
    %5 = arith.mulf %4, %0 : f32
    %cst_0 = arith.constant 0.000000e+00 : f32
    %6 = arith.maximumf %5, %cst_0 : f32
    %c3 = arith.constant 3 : index
    %7 = memref.load %arg0[%c3] : memref<16xf32, #tpu.memory_space<smem>>
    %8 = arith.mulf %7, %0 : f32
    %cst_1 = arith.constant 0.000000e+00 : f32
    %9 = arith.maximumf %8, %cst_1 : f32
    %c4 = arith.constant 4 : index
    %10 = memref.load %arg0[%c4] : memref<16xf32, #tpu.memory_space<smem>>
    %11 = arith.mulf %10, %3 : f32
    %c5 = arith.constant 5 : index
    %12 = memref.load %arg0[%c5] : memref<16xf32, #tpu.memory_space<smem>>
    %13 = arith.mulf %12, %6 : f32
    %14 = arith.addf %11, %13 : f32
    %c6 = arith.constant 6 : index
    %15 = memref.load %arg0[%c6] : memref<16xf32, #tpu.memory_space<smem>>
    %16 = arith.mulf %15, %9 : f32
    %17 = arith.addf %14, %16 : f32
    %cst_2 = arith.constant 0.000000e+00 : f32
    %18 = arith.maximumf %17, %cst_2 : f32
    %c7 = arith.constant 7 : index
    %19 = memref.load %arg0[%c7] : memref<16xf32, #tpu.memory_space<smem>>
    %20 = arith.mulf %19, %3 : f32
    %c8 = arith.constant 8 : index
    %21 = memref.load %arg0[%c8] : memref<16xf32, #tpu.memory_space<smem>>
    %22 = arith.mulf %21, %6 : f32
    %23 = arith.addf %20, %22 : f32
    %c9 = arith.constant 9 : index
    %24 = memref.load %arg0[%c9] : memref<16xf32, #tpu.memory_space<smem>>
    %25 = arith.mulf %24, %9 : f32
    %26 = arith.addf %23, %25 : f32
    %cst_3 = arith.constant 0.000000e+00 : f32
    %27 = arith.maximumf %26, %cst_3 : f32
    %c10 = arith.constant 10 : index
    %28 = memref.load %arg0[%c10] : memref<16xf32, #tpu.memory_space<smem>>
    %29 = arith.mulf %28, %3 : f32
    %c11 = arith.constant 11 : index
    %30 = memref.load %arg0[%c11] : memref<16xf32, #tpu.memory_space<smem>>
    %31 = arith.mulf %30, %6 : f32
    %32 = arith.addf %29, %31 : f32
    %c12 = arith.constant 12 : index
    %33 = memref.load %arg0[%c12] : memref<16xf32, #tpu.memory_space<smem>>
    %34 = arith.mulf %33, %9 : f32
    %35 = arith.addf %32, %34 : f32
    %cst_4 = arith.constant 0.000000e+00 : f32
    %36 = arith.maximumf %35, %cst_4 : f32
    %c13 = arith.constant 13 : index
    %37 = memref.load %arg0[%c13] : memref<16xf32, #tpu.memory_space<smem>>
    %38 = arith.mulf %37, %18 : f32
    %c14 = arith.constant 14 : index
    %39 = memref.load %arg0[%c14] : memref<16xf32, #tpu.memory_space<smem>>
    %40 = arith.mulf %39, %27 : f32
    %41 = arith.addf %38, %40 : f32
    %c15 = arith.constant 15 : index
    %42 = memref.load %arg0[%c15] : memref<16xf32, #tpu.memory_space<smem>>
    %43 = arith.mulf %42, %36 : f32
    %44 = arith.addf %41, %43 : f32
    %c0_5 = arith.constant 0 : index
    %45 = memref.load %arg1[%c0_5] : memref<1xf32, #tpu.memory_space<smem>>
    memref.store %44, %arg1[%c0_5] : memref<1xf32, #tpu.memory_space<smem>>
    return
  }
}

</mosaic_0001>

<llo_original>
// kernel: tpu_custom_call.1
$region0: #{tpu_custom_call.1}
  #allocation0 [shape = 'u32[]', space=smem, size = 0x4, offset = 0x4, fixed_abs, tag = 'smem constant byte address 0x4 - core index']
  #allocation1 [shape = 'u32[144,128]{1,0:T(1,128)}', space=vmem, size = 0x12000, scoped, tag = 'internal scratch']
  %s0 = inlined_call_operand.hbm [shape: f32[16], index: 0, kind: input, shape index: {}]
  %s1 = inlined_call_operand.hbm [shape: f32[1], index: 1, kind: output, shape index: {}]
  %s2 = sld [smem:[#allocation0]]
  $region18: #{tpu_custom_call.1} parent=0
    _
  %s4 = ssub.s32 1, %s2
  %s5 = scalar_select 0, %s4, %s2
  $region1: #{tpu_custom_call.1} parent=0
    #allocation2 [shape = 'u8[512]{0}', space=smem, size = 0x200, scoped, tag = 'input window, operand 0, single buffered']
    #allocation3 [shape = 's32[1]{0}', space=sflag, size = 0x4, scoped, tag = 'scoped memory for tpu_custom_call.1']
    #allocation4 [shape = 's32[1]{0}', space=sflag, size = 0x4, scoped, tag = 'scoped memory for tpu_custom_call.1']
    #allocation5 [shape = 'u8[512]{0}', space=smem, size = 0x200, scoped, tag = 'output window, operand 0, single buffered']
    %6 = vsyncpa [#allocation3], 0
    %7 = vsyncpa [#allocation4], 0
    // Predicated region
    $region2: #{tpu_custom_call.1} parent=1 // pred_check
      _
    $region3: #{tpu_custom_call.1} parent=1 // pred_check_branch
      %9 = sbr.rel (0) target = $region5
    $region4: #{tpu_custom_call.1} parent=1 // pred_region
      %s11 = ssub.s32 16, 16
      %12 = vsyncadd [#allocation3], %s11
      %15 = dma.hbm_to_smem %s0, 16, [#allocation2], [#allocation3]
    $region5: #{tpu_custom_call.1} parent=1 // pred_fallthru
      _
    // Predicated region
    $region6: #{tpu_custom_call.1} parent=1 // pred_check
      _
    $region7: #{tpu_custom_call.1} parent=1 // pred_check_branch
      %17 = sbr.rel (0) target = $region9
    $region8: #{tpu_custom_call.1} parent=1 // pred_region
      %18 = dma.done [#allocation3], 16
    $region9: #{tpu_custom_call.1} parent=1 // pred_fallthru
      _
    %19 = sfence
    %s20 = sld [smem:[#allocation2]]
    %s21 = sld [smem:[#allocation2 + $0x1]]
    %s22 = smul.f32 %s21, %s20
    %s23 = smax.f32 %s22, 0.0
    %s24 = sld [smem:[#allocation2 + $0x2]]
    %s25 = smul.f32 %s24, %s20
    %s26 = smax.f32 %s25, 0.0
    %s27 = sld [smem:[#allocation2 + $0x3]]
    %s28 = smul.f32 %s27, %s20
    %s29 = smax.f32 %s28, 0.0
    %s30 = sld [smem:[#allocation2 + $0x4]]
    %s31 = smul.f32 %s30, %s23
    %s32 = sld [smem:[#allocation2 + $0x5]]
    %s33 = smul.f32 %s32, %s26
    %s34 = sadd.f32 %s31, %s33
    %s35 = sld [smem:[#allocation2 + $0x6]]
    %s36 = smul.f32 %s35, %s29
    %s37 = sadd.f32 %s34, %s36
    %s38 = smax.f32 %s37, 0.0
    %s39 = sld [smem:[#allocation2 + $0x7]]
    %s40 = smul.f32 %s39, %s23
    %s41 = sld [smem:[#allocation2 + $0x8]]
    %s42 = smul.f32 %s41, %s26
    %s43 = sadd.f32 %s40, %s42
    %s44 = sld [smem:[#allocation2 + $0x9]]
    %s45 = smul.f32 %s44, %s29
    %s46 = sadd.f32 %s43, %s45
    %s47 = smax.f32 %s46, 0.0
    %s48 = sld [smem:[#allocation2 + $0xa]]
    %s49 = smul.f32 %s48, %s23
    %s50 = sld [smem:[#allocation2 + $0xb]]
    %s51 = smul.f32 %s50, %s26
    %s52 = sadd.f32 %s49, %s51
    %s53 = sld [smem:[#allocation2 + $0xc]]
    %s54 = smul.f32 %s53, %s29
    %s55 = sadd.f32 %s52, %s54
    %s56 = smax.f32 %s55, 0.0
    %s57 = sld [smem:[#allocation2 + $0xd]]
    %s58 = smul.f32 %s57, %s38
    %s59 = sld [smem:[#allocation2 + $0xe]]
    %s60 = smul.f32 %s59, %s47
    %s61 = sadd.f32 %s58, %s60
    %s62 = sld [smem:[#allocation2 + $0xf]]
    %s63 = smul.f32 %s62, %s56
    %s64 = sadd.f32 %s61, %s63
    %s65 = scalar_lea.smem [#allocation5], 0
    %66 = sst [smem:[%s65]] %s64
    // Predicated region
    $region10: #{tpu_custom_call.1} parent=1 // pred_check
      _
    $region11: #{tpu_custom_call.1} parent=1 // pred_check_branch
      %68 = sbr.rel (0) target = $region13
    $region12: #{tpu_custom_call.1} parent=1 // pred_region
      %s70 = ssub.s32 16, 16
      %71 = vsyncadd [#allocation4], %s70
      %74 = dma.smem_to_hbm [#allocation5], 16, %s1, [#allocation4]
    $region13: #{tpu_custom_call.1} parent=1 // pred_fallthru
      _
    // Predicated region
    $region14: #{tpu_custom_call.1} parent=1 // pred_check
      _
    $region15: #{tpu_custom_call.1} parent=1 // pred_check_branch
      %76 = sbr.rel (0) target = $region17
    $region16: #{tpu_custom_call.1} parent=1 // pred_region
      %77 = dma.done [#allocation4], 16
    $region17: #{tpu_custom_call.1} parent=1 // pred_fallthru
      _
    %78 = sfence
    %79 = vsyncpa [#allocation3], 1
    %80 = vsyncpa [#allocation4], 1

</llo_original>
